<compile_context>
chip_gen: v7x
topology: tpu7x:2x2x1
jax: 0.10.0
libtpu: 0.0.40
codegen_flags: <defaults>
</compile_context>

<pallas_src>
import jax
import jax.numpy as jnp
from jax.experimental import pallas as pl
from jax.experimental.pallas import tpu as pltpu


def _proj_kernel(x_ref, w_ref, o_ref):
    # x_ref: (K, TILE_T)  channel-major token slab, exactly as stored in NCHW
    # w_ref: (K, TILE_N)  slice of the (K, d_model) projection matrix
    # o_ref: (TILE_T, TILE_N)
    acc = jax.lax.dot_general(
        x_ref[...],
        w_ref[...],
        dimension_numbers=(((0,), (0,)), ((), ())),  # contract dim 0 of both
        preferred_element_type=jnp.float32,
    )
    o_ref[...] = acc.astype(o_ref.dtype)


def _cdiv(a, b):
    return -(-a // b)


def patch_proj_in(x, weight, patch_size=1, *, max_tile_tokens=1024):
    """Equivalent of PatchProjIn.forward.

    x:      (b, c, h, w)        NCHW, like PyTorch
    weight: (d_model, c, p, p)  Conv2d weight, bias=False
    returns (b, (h//p)*(w//p), d_model)
    """
    b, c, h, w = x.shape
    d_model = weight.shape[0]
    p = patch_size
    assert h % p == 0 and w % p == 0
    hp, wp = h // p, w // p
    n_tokens = hp * wp
    K = c * p * p

    # Compute / output dtype follows the activations; only the tiny weight is
    # cast.  (No silent f32 promotion of the dominant output stream.)
    out_dtype = x.dtype
    itemsize = jnp.dtype(out_dtype).itemsize

    if p == 1:
        # metadata-only reshape: no HBM traffic
        x_r = x.reshape(b, c, n_tokens)
    else:
        # TODO(synk): fold patch extraction into the kernel's index_map to
        # avoid this XLA-side transpose (one extra HBM pass over x).
        x_r = x.reshape(b, c, hp, p, wp, p)
        x_r = jnp.transpose(x_r, (0, 1, 3, 5, 2, 4)).reshape(b, K, n_tokens)

    # Conv weight (d_model, c, p, p) -> (K, d_model); tiny, negligible.
    w_mat = weight.reshape(d_model, K).T.astype(out_dtype)

    # ------------------------------------------------------------------ VMEM
    try:
        info = pltpu.get_tpu_info()
        vmem_capacity = int(getattr(info, "vmem_capacity_bytes", 64 << 20))
    except Exception:  # no TPU info available: assume the smallest (v7x) VMEM
        vmem_capacity = 64 << 20
    vmem_cap = int(vmem_capacity * 3 // 4)          # never request full VMEM
    budget = min(40 << 20, int(vmem_capacity * 0.6))  # tile working-set budget

    def working_set(tt, tn):
        # double-buffered I/O tiles + f32 dot result + f32 operand headroom
        return (
            2 * (K * tt + K * tn + tt * tn) * itemsize
            + tt * tn * 4
            + (K * tt + K * tn) * 4
        )

    # -------------------------------------------------------- tile selection
    def pick_tile_t(tn):
        if n_tokens <= 128:
            return n_tokens if working_set(n_tokens, tn) <= budget else None
        best = None
        t = 128
        limit = min(n_tokens, max_tile_tokens)
        while t <= limit:
            if working_set(t, tn) <= budget:
                best = t
            t += 128
        return best

    # Prefer the full output width (one contiguous HBM write-back per tile).
    tile_n = d_model
    tile_t = pick_tile_t(tile_n)
    if tile_t is None and d_model >= 256:
        tn = (d_model // 2 // 128) * 128
        while tn >= 128 and tile_t is None:
            cand = pick_tile_t(tn)
            if cand is not None:
                tile_t, tile_n = cand, tn
            tn -= 128
    if tile_t is None:
        # last resort (pathological budgets): smallest legal tiles
        tile_n = d_model if d_model <= 128 else 128
        tile_t = n_tokens if n_tokens <= 128 else 128

    # Megacore: keep >= 8 grid steps so both TensorCores pipeline writeback.
    def n_steps(tt, tn):
        return b * _cdiv(d_model, tn) * _cdiv(n_tokens, tt)

    while n_steps(tile_t, tile_n) < 8 and tile_t > 128 and tile_t % 128 == 0:
        new_t = max(128, ((tile_t // 2) // 128) * 128)
        if new_t >= tile_t:
            break
        tile_t = new_t

    grid = (b, _cdiv(d_model, tile_n), _cdiv(n_tokens, tile_t))

    vmem_limit = int(
        min(max(working_set(tile_t, tile_n) * 5 // 4 + (2 << 20), 8 << 20), vmem_cap)
    )

    cost = pl.CostEstimate(
        flops=2 * b * n_tokens * K * d_model,
        transcendentals=0,
        bytes_accessed=(b * n_tokens * K + K * d_model + b * n_tokens * d_model)
        * itemsize,
    )

    out = pl.pallas_call(
        _proj_kernel,
        out_shape=jax.ShapeDtypeStruct((b, n_tokens, d_model), out_dtype),
        grid_spec=pltpu.PrefetchScalarGridSpec(
            num_scalar_prefetch=0,
            grid=grid,  # (batch, n_tiles, token_tiles): weight constant on the
            # inner token loop, so it is not re-fetched per step.
            in_specs=[
                # x: (b, K, n_tokens); batch squeezed, full K, token tile
                pl.BlockSpec((None, K, tile_t), lambda bi, ni, ti: (bi, 0, ti)),
                # weight: (K, d_model); full K, d_model tile
                pl.BlockSpec((K, tile_n), lambda bi, ni, ti: (0, ni)),
            ],
            out_specs=pl.BlockSpec(
                (None, tile_t, tile_n), lambda bi, ni, ti: (bi, ti, ni)
            ),
        ),
        compiler_params=pltpu.CompilerParams(
            dimension_semantics=("parallel", "parallel", "parallel"),
            vmem_limit_bytes=vmem_limit,
        ),
        cost_estimate=cost,
    )(x_r, w_mat)

    return out


def _reference(x, weight, patch_size=1):
    # pure-JAX reference: strided conv (no bias) + rearrange b c h w -> b (h w) c
    y = jax.lax.conv_general_dilated(
        x,
        weight,
        window_strides=(patch_size, patch_size),
        padding="VALID",
        dimension_numbers=("NCHW", "OIHW", "NCHW"),
    )
    b, d, hh, ww = y.shape
    return jnp.transpose(y, (0, 2, 3, 1)).reshape(b, hh * ww, d)


if __name__ == "__main__":
    # small shapes consistent with the module
    batch, channels, spatial = 2, 4, 16
    d_model, patch_size = 32, 1

    key = jax.random.PRNGKey(0)
    kx, kw = jax.random.split(key)
    x = jax.random.normal(kx, (batch, channels, spatial, spatial), dtype=jnp.float32)
    # deterministic synthetic Conv2d weight (d_model, channels, p, p), bias=False
    weight = jax.random.normal(
        kw, (d_model, channels, patch_size, patch_size), dtype=jnp.float32
    ) * (1.0 / (channels * patch_size * patch_size) ** 0.5)

    out = jax.block_until_ready(patch_proj_in(x, weight, patch_size=patch_size))

    ref = _reference(x, weight, patch_size=patch_size)
    assert out.shape == (batch, spatial * spatial, d_model), out.shape
    assert jnp.allclose(out, ref, atol=1e-4, rtol=1e-4), "mismatch vs reference"

    print("KERNEL_OK")
</pallas_src>

<mosaic_0001>
module attributes {stable_mosaic.version = 11 : i64} {
  func.func @_proj_kernel(%arg0: i32, %arg1: i32, %arg2: i32, %arg3: memref<1x4x128xf32, #tpu.memory_space<vmem>>, %arg4: memref<4x32xf32, #tpu.memory_space<vmem>>, %arg5: memref<1x128x32xf32, #tpu.memory_space<vmem>>) attributes {dimension_semantics = [#tpu.dimension_semantics<parallel>, #tpu.dimension_semantics<parallel>, #tpu.dimension_semantics<parallel>], iteration_bounds = array<i64: 2, 1, 2>, scalar_prefetch = 0 : i64, scratch_operands = 0 : i64, tpu.core_type = #tpu.core_type<tc>, window_params = [{transform_indices = @transform_0, window_bounds = array<i64: 1, 4, 128>}, {transform_indices = @transform_1, window_bounds = array<i64: 4, 32>}, {transform_indices = @transform_2, window_bounds = array<i64: 1, 128, 32>}]} {
    %c0 = arith.constant 0 : index
    %c0_0 = arith.constant 0 : index
    %c0_1 = arith.constant 0 : index
    %0 = vector.load %arg3[%c0, %c0_0, %c0_1] : memref<1x4x128xf32, #tpu.memory_space<vmem>>, vector<1x4x128xf32>
    %1 = vector.shape_cast %0 : vector<1x4x128xf32> to vector<4x128xf32>
    %c0_2 = arith.constant 0 : index
    %c0_3 = arith.constant 0 : index
    %2 = vector.load %arg4[%c0_2, %c0_3] : memref<4x32xf32, #tpu.memory_space<vmem>>, vector<4x32xf32>
    %cst = arith.constant dense<0.000000e+00> : vector<128x32xf32>
    %3 = tpu.matmul %1, %2, %cst {dimension_numbers = #tpu.dot_dimension_numbers<[0], [0], [1], [1], [0, 1, 1, 1], [], []>} : vector<4x128xf32>, vector<4x32xf32>, vector<128x32xf32> -> vector<128x32xf32>
    %c0_4 = arith.constant 0 : index
    %c0_5 = arith.constant 0 : index
    %c0_6 = arith.constant 0 : index
    %4 = vector.load %arg5[%c0_4, %c0_5, %c0_6] : memref<1x128x32xf32, #tpu.memory_space<vmem>>, vector<1x128x32xf32>
    %5 = vector.shape_cast %4 : vector<1x128x32xf32> to vector<128x32xf32>
    %6 = vector.shape_cast %3 : vector<128x32xf32> to vector<1x128x32xf32>
    tpu.vector_store %arg5[%c0_4, %c0_5, %c0_6], %6 {strides = array<i32>} : memref<1x128x32xf32, #tpu.memory_space<vmem>>, vector<1x128x32xf32>,
    return
  }
  func.func @transform_0(%arg0: i32, %arg1: i32, %arg2: i32) -> (i32, i32, i32) {
    %c0_i32 = arith.constant 0 : i32
    %c0_i32_0 = arith.constant 0 : i32
    return %arg0, %c0_i32, %arg2 : i32, i32, i32
  }
  func.func @transform_1(%arg0: i32, %arg1: i32, %arg2: i32) -> (i32, i32) {
    %c0_i32 = arith.constant 0 : i32
    %c0_i32_0 = arith.constant 0 : i32
    return %c0_i32, %arg1 : i32, i32
  }
  func.func @transform_2(%arg0: i32, %arg1: i32, %arg2: i32) -> (i32, i32, i32) {
    %c0_i32 = arith.constant 0 : i32
    return %arg0, %arg2, %arg1 : i32, i32, i32
  }
}

</mosaic_0001>

<llo_original>
// kernel: tpu_custom_call.1
$region0: #{tpu_custom_call.1}
  #allocation0 [shape = 'u32[]', space=smem, size = 0x4, offset = 0x4, fixed_abs, tag = 'smem constant byte address 0x4 - core index']
  #allocation1 [shape = 'u32[144,128]{1,0:T(1,128)}', space=vmem, size = 0x12000, scoped, tag = 'internal scratch']
  %s0 = inlined_call_operand.hbm [shape: f32[2,4,256], index: 0, kind: input, shape index: {}]
  %s1 = inlined_call_operand.hbm [shape: f32[4,32], index: 1, kind: input, shape index: {}]
  %s2 = inlined_call_operand.vmem [shape: f32[2,256,32], index: 2, kind: output, shape index: {}]
  %s3 = sld [smem:[#allocation0]]
  $region49: #{tpu_custom_call.1} parent=0
    _
  %s5 = ssub.s32 1, %s3
  %s6 = scalar_select 0, %s5, %s3
  $region1: #{tpu_custom_call.1} parent=0
    #allocation2 [shape = 'u8[4096]{0}', space=vmem, size = 0x1000, scoped, tag = 'input window, operand 0']
    #allocation3 [shape = 's32[2]{0}', space=sflag, size = 0x8, scoped, tag = 'scoped memory for tpu_custom_call.1']
    #allocation4 [shape = 'u8[2048]{0}', space=vmem, size = 0x800, scoped, tag = 'input window, operand 1, single buffered']
    #allocation5 [shape = 's32[1]{0}', space=sflag, size = 0x4, scoped, tag = 'scoped memory for tpu_custom_call.1']
    %7 = vsyncpa [#allocation3], 0
    %s8 = scalar_lea.sflag [#allocation3], 1
    %9 = vsyncpa %s8, 0
    %10 = vsyncpa [#allocation5], 0
    loop: start=0, step=1, limit=6
    $region2: #{tpu_custom_call.1} parent=1 // loop_pre_header
      _
    $region3: #{tpu_custom_call.1} parent=1 // loop_header
      %s12 = sphi 0, %s16
      %p13 = scmp.ge.s32.totalorder %s12, 6
      %s19 = sphi 0, %s38
      %s20 = sphi 0, %s34
      %s21 = sphi 0, %s30
      %s22 = sphi 0, %s19
      %s23 = sphi 0, %s20
      %s24 = sphi 0, %s21
      %s25 = sphi 0, %s22
      %s26 = sphi 0, %s23
      %s27 = sphi 0, %s24
      %s43 = sphi 0, %s45
      %s46 = sphi 0, %s43
      %s47 = sphi 0, %s46
      %s63 = sphi 0, %s47
      %s69 = sphi 0, %s71
      %s72 = sphi 0, %s69
      %s73 = sphi 0, %s72
      %s89 = sphi 0, %s73
      %s99 = sphi 0, %s101
      %s102 = sphi 0, %s99
      %s103 = sphi 0, %s102
      %s119 = sphi 0, %s103
    $region4: #{tpu_custom_call.1} parent=1 // loop_header_branch
      %15 = sbr.rel (%p13) target = $region8
    $region5: #{tpu_custom_call.1} parent=1 // loop_body
      %s17 = ssub.s32 %s12, 1
      %s18 = ssub.s32 %s12, 2
      %s28 = sadd.s32 1, %s21
      %p29 = scmp.ge.s32.totalorder %s28, 2
      %s30 = scalar_select %p29, 0, %s28
      %s31 = sadd.s32 1, %s20
      %s32 = scalar_select %p29, %s31, %s20
      %p33 = scmp.ge.s32.totalorder %s32, 1
      %s34 = scalar_select %p33, 0, %s32
      %s35 = sadd.s32 1, %s19
      %s36 = scalar_select %p33, %s35, %s19
      %p37 = scmp.ge.s32.totalorder %s36, 2
      %s38 = scalar_select %p37, 0, %s36
      %s39 = ssub.s32 %s19, %s38
      %s40 = ssub.s32 %s21, %s30
      %s41 = sor.u32 %s39, %s40
      %p42 = scmp.eq.s32.totalorder %s41, 0
      %s44 = sadd.s32 %s43, 1
      %s45 = scalar_select %p42, %s43, %s44
      %p48 = pneg %p42
      %p49 = scmp.eq.s32.totalorder %s12, 3
      %p50 = por %p48, %p49
      %p51 = scmp.ne.s32.totalorder %s43, %s46
      %p52 = scmp.eq.s32.totalorder %s12, 0
      %p53 = por %p51, %p52
      %p54 = scmp.ne.s32.totalorder %s43, %s46
      %p55 = scmp.eq.s32.totalorder %s17, 3
      %p56 = por %p54, %p55
      %p57 = scmp.ne.s32.totalorder %s46, %s47
      %p58 = scmp.eq.s32.totalorder %s17, 0
      %p59 = por %p57, %p58
      %p60 = scmp.ne.s32.totalorder %s46, %s47
      %p61 = scmp.eq.s32.totalorder %s18, 3
      %p62 = por %p60, %p61
      %p64 = scmp.ne.s32.totalorder %s47, %s63
      %p65 = scmp.eq.s32.totalorder %s18, 0
      %p66 = por %p64, %p65
      %s67 = ssub.s32 %s20, %s34
      %p68 = scmp.eq.s32.totalorder %s67, 0
      %s70 = sadd.s32 %s69, 1
      %s71 = scalar_select %p68, %s69, %s70
      %p74 = pneg %p68
      %p75 = scmp.eq.s32.totalorder %s12, 3
      %p76 = por %p74, %p75
      %p77 = scmp.ne.s32.totalorder %s69, %s72
      %p78 = scmp.eq.s32.totalorder %s12, 0
      %p79 = por %p77, %p78
      %p80 = scmp.ne.s32.totalorder %s69, %s72
      %p81 = scmp.eq.s32.totalorder %s17, 3
      %p82 = por %p80, %p81
      %p83 = scmp.ne.s32.totalorder %s72, %s73
      %p84 = scmp.eq.s32.totalorder %s17, 0
      %p85 = por %p83, %p84
      %p86 = scmp.ne.s32.totalorder %s72, %s73
      %p87 = scmp.eq.s32.totalorder %s18, 3
      %p88 = por %p86, %p87
      %p90 = scmp.ne.s32.totalorder %s73, %s89
      %p91 = scmp.eq.s32.totalorder %s18, 0
      %p92 = por %p90, %p91
      %s93 = ssub.s32 %s19, %s38
      %s94 = ssub.s32 %s21, %s30
      %s95 = sor.u32 %s93, %s94
      %s96 = ssub.s32 %s20, %s34
      %s97 = sor.u32 %s95, %s96
      %p98 = scmp.eq.s32.totalorder %s97, 0
      %s100 = sadd.s32 %s99, 1
      %s101 = scalar_select %p98, %s99, %s100
      %p104 = pneg %p98
      %p105 = scmp.eq.s32.totalorder %s12, 3
      %p106 = por %p104, %p105
      %p107 = scmp.ne.s32.totalorder %s99, %s102
      %p108 = scmp.eq.s32.totalorder %s12, 0
      %p109 = por %p107, %p108
      %p110 = scmp.ne.s32.totalorder %s99, %s102
      %p111 = scmp.eq.s32.totalorder %s17, 3
      %p112 = por %p110, %p111
      %p113 = scmp.ne.s32.totalorder %s102, %s103
      %p114 = scmp.eq.s32.totalorder %s17, 0
      %p115 = por %p113, %p114
      %p116 = scmp.ne.s32.totalorder %s102, %s103
      %p117 = scmp.eq.s32.totalorder %s18, 3
      %p118 = por %p116, %p117
      %p120 = scmp.ne.s32.totalorder %s103, %s119
      %p121 = scmp.eq.s32.totalorder %s18, 0
      %p122 = por %p120, %p121
      %p123 = scmp.le.s32.totalorder 1, %s12
      %p124 = scmp.lt.s32.totalorder %s12, 5
      %p125 = pnand %p123, %p124
      %p126 = pneg %p125
      // Predicated region
      $region9: #{tpu_custom_call.1} parent=5 // pred_check
        _
      $region10: #{tpu_custom_call.1} parent=5 // pred_check_branch
        %128 = sbr.rel (%p125) target = $region12
      $region11: #{tpu_custom_call.1} parent=5 // pred_region
        %s129 = ssub.s32 %s12, 1
        // Predicated region
        $region13: #{tpu_custom_call.1} parent=11 // pred_check
          %p130 = pneg %p85
        $region14: #{tpu_custom_call.1} parent=11 // pred_check_branch
          %132 = sbr.rel (%p130) target = $region16
        $region15: #{tpu_custom_call.1} parent=11 // pred_region
          %s134 = ssub.s32 64, 64
          %135 = vsyncadd [#allocation5], %s134
          %s136 = smul.addr %s23, 64
          %s137 = scalar_lea.hbm %s1, %s136
          %s139 = sshll.u32 [#allocation4], 4
          %s140 = int_to_ptr.vmem [resolvable:$true] %s139
          %142 = dma.hbm_to_vmem [thread:$0]  %s137, 64, %s140, [#allocation5]
        $region16: #{tpu_custom_call.1} parent=11 // pred_fallthru
          _
      $region12: #{tpu_custom_call.1} parent=5 // pred_fallthru
        _
      %p143 = scmp.lt.s32.totalorder %s12, 4
      // Predicated region
      $region17: #{tpu_custom_call.1} parent=5 // pred_check
        %p144 = pneg %p143
      $region18: #{tpu_custom_call.1} parent=5 // pred_check_branch
        %146 = sbr.rel (%p144) target = $region20
      $region19: #{tpu_custom_call.1} parent=5 // pred_region
        // Predicated region
        $region21: #{tpu_custom_call.1} parent=19 // pred_check
          %p147 = pneg %p53
        $region22: #{tpu_custom_call.1} parent=19 // pred_check_branch
          %149 = sbr.rel (%p147) target = $region24
        $region23: #{tpu_custom_call.1} parent=19 // pred_region
          %s150 = sand.u32 %s43, 1
          %s151 = scalar_lea.sflag [#allocation3], %s150
          %s152 = sand.u32 %s43, 1
          %s153 = smul.addr %s152, 4
          %s154 = scalar_lea.vmem [#allocation2], %s153
          %s156 = ssub.s32 64, 64
          %157 = vsyncadd %s151, %s156
          %s158 = smul.addr %s19, 2
          %s159 = sadd.s32 %s21, %s158
          %s160 = smul.addr %s159, 64
          %s161 = scalar_lea.hbm %s0, %s160
          %s163 = sshll.u32 %s154, 4
          %s164 = int_to_ptr.vmem [resolvable:$true] %s163
          %166 = dma.hbm_to_vmem [thread:$0]  %s161, 64, %s164, %s151
        $region24: #{tpu_custom_call.1} parent=19 // pred_fallthru
          _
      $region20: #{tpu_custom_call.1} parent=5 // pred_fallthru
        _
      %p167 = scmp.le.s32.totalorder 1, %s12
      %p168 = scmp.lt.s32.totalorder %s12, 5
      %p169 = pnand %p167, %p168
      %p170 = pneg %p169
      // Predicated region
      $region25: #{tpu_custom_call.1} parent=5 // pred_check
        _
      $region26: #{tpu_custom_call.1} parent=5 // pred_check_branch
        %172 = sbr.rel (%p169) target = $region28
      $region27: #{tpu_custom_call.1} parent=5 // pred_region
        %s173 = ssub.s32 %s12, 1
        %s174 = sand.u32 %s46, 1
        %s175 = scalar_lea.sflag [#allocation3], %s174
        %s176 = sand.u32 %s46, 1
        %s177 = smul.addr %s176, 4
        %s178 = scalar_lea.vmem [#allocation2], %s177
        // Predicated region
        $region29: #{tpu_custom_call.1} parent=27 // pred_check
          %p179 = pneg %p59
        $region30: #{tpu_custom_call.1} parent=27 // pred_check_branch
          %181 = sbr.rel (%p179) target = $region32
        $region31: #{tpu_custom_call.1} parent=27 // pred_region
          %182 = dma.done %s175, 64
        $region32: #{tpu_custom_call.1} parent=27 // pred_fallthru
          _
        // Predicated region
        $region33: #{tpu_custom_call.1} parent=27 // pred_check
          %p183 = pneg %p85
        $region34: #{tpu_custom_call.1} parent=27 // pred_check_branch
          %185 = sbr.rel (%p183) target = $region36
        $region35: #{tpu_custom_call.1} parent=27 // pred_region
          %186 = dma.done [#allocation5], 64
        $region36: #{tpu_custom_call.1} parent=27 // pred_fallthru
          _
        %s187 = sand.u32 %s46, 1
        %s188 = scalar_lea.sflag [#allocation3], %s187
        %s189 = sand.u32 %s46, 1
        %s190 = smul.addr %s189, 4
        %s191 = scalar_lea.vmem [#allocation2], %s190
        %p192 = pneg %p59
        %p193 = pneg %p56
        %p194 = pneg %p85
        %p195 = pneg %p82
        %p196 = pneg %p115
        %p197 = pneg %p112
        %s198 = smul.u32 16, %s24
        %p199 = scmp.lt.s32.totalorder %s22, 1
        %s200 = scalar_select %p199, %s22, 1
        %p201 = scmp.lt.s32.totalorder %s198, 31
        %s202 = scalar_select %p201, %s198, 31
        %p203 = scmp.lt.s32.totalorder %s23, 0
        %s204 = scalar_select %p203, %s23, 0
        %s205 = sadd.s32 %s204, %s202
        %s206 = smul.addr %s200, 32
        %s207 = sadd.s32 %s205, %s206
        %s208 = smul.addr %s207, 8
        %s209 = scalar_lea.vmem %s2, %s208
        %s210 = smul.u32 16, %s24
        %p211 = scmp.lt.s32.totalorder %s22, 1
        %s212 = scalar_select %p211, %s22, 1
        %p213 = scmp.lt.s32.totalorder %s210, 31
        %s214 = scalar_select %p213, %s210, 31
        %p215 = scmp.lt.s32.totalorder %s23, 0
        %s216 = scalar_select %p215, %s23, 0
        %s217 = sadd.s32 %s216, %s214
        %s218 = smul.addr %s212, 32
        %s219 = sadd.s32 %s217, %s218
        %s220 = smul.addr %s219, 8
        %s221 = scalar_lea.vmem %s2, %s220
        %s222 = smul.u32 16, %s24
        %v223 = vld [vmem:[%s178] sm:$0xf]
        %v224 = vld [vmem:[#allocation4] sm:$0xf]
        %225 = vxpose.xlu0.b32.start [1/16] %v223, 128
        %226 = vxpose.xlu0.b32.cont [2/16] 0.0, 128
        %227 = vxpose.xlu0.b32.cont [3/16] 0.0, 128
        %228 = vxpose.xlu0.b32.cont [4/16] 0.0, 128
        %229 = vxpose.xlu0.b32.cont [5/16] 0.0, 128
        %230 = vxpose.xlu0.b32.cont [6/16] 0.0, 128
        %231 = vxpose.xlu0.b32.cont [7/16] 0.0, 128
        %232 = vxpose.xlu0.b32.cont [8/16] 0.0, 128
        %233 = vxpose.xlu0.b32.cont [9/16] 0.0, 128
        %234 = vxpose.xlu0.b32.cont [10/16] 0.0, 128
        %235 = vxpose.xlu0.b32.cont [11/16] 0.0, 128
        %236 = vxpose.xlu0.b32.cont [12/16] 0.0, 128
        %237 = vxpose.xlu0.b32.cont [13/16] 0.0, 128
        %238 = vxpose.xlu0.b32.cont [14/16] 0.0, 128
        %239 = vxpose.xlu0.b32.cont [15/16] 0.0, 128
        %240 = vxpose.xlu0.b32.end [16/16] 0.0, 128
        %v241 = vpop.trf.xlu0
        %v242 = vpop.trf.xlu0
        %v243 = vpop.trf.xlu0
        %v244 = vpop.trf.xlu0
        %v245 = vpop.trf.xlu0
        %v246 = vpop.trf.xlu0
        %v247 = vpop.trf.xlu0
        %v248 = vpop.trf.xlu0
        %v249 = vpop.trf.xlu0
        %v250 = vpop.trf.xlu0
        %v251 = vpop.trf.xlu0
        %v252 = vpop.trf.xlu0
        %v253 = vpop.trf.xlu0
        %v254 = vpop.trf.xlu0
        %v255 = vpop.trf.xlu0
        %v256 = vpop.trf.xlu0
        %vm257 = vcmask 31744
        %v259 = vsel %vm257, %v241, 0
        %v262 = vsel %vm257, %v242, 0
        %v265 = vsel %vm257, %v243, 0
        %v268 = vsel %vm257, %v244, 0
        %v271 = vsel %vm257, %v245, 0
        %v274 = vsel %vm257, %v246, 0
        %v277 = vsel %vm257, %v247, 0
        %v280 = vsel %vm257, %v248, 0
        %v283 = vsel %vm257, %v249, 0
        %v286 = vsel %vm257, %v250, 0
        %v289 = vsel %vm257, %v251, 0
        %v292 = vsel %vm257, %v252, 0
        %v295 = vsel %vm257, %v253, 0
        %v298 = vsel %vm257, %v254, 0
        %v301 = vsel %vm257, %v255, 0
        %v304 = vsel %vm257, %v256, 0
        %vm306 = vcmask 1043456
        %v308 = vsel %vm306, %v224, 0
        %310 = vmatprep.subr.mxu0 0.0
        %311 = vmatpush1.msra.mxu0 %v308
        %312 = vmatprep.subr.mxu0 0.0
        %313 = vmatpush1.msra.mxu0 0.0
        %314 = vmatprep.subr.mxu0 0.0
        %315 = vmatpush1.msra.mxu0 0.0
        %316 = vmatprep.subr.mxu0 0.0
        %317 = vmatpush1.msra.mxu0 0.0
        %318 = vmatprep.subr.mxu0 0.0
        %319 = vmatpush1.msra.mxu0 0.0
        %320 = vmatprep.subr.mxu0 0.0
        %321 = vmatpush1.msra.mxu0 0.0
        %322 = vmatprep.subr.mxu0 0.0
        %323 = vmatpush1.msra.mxu0 0.0
        %324 = vmatprep.subr.mxu0 0.0
        %325 = vmatpush1.msra.mxu0 0.0
        %326 = vmatprep.subr.mxu0 0.0
        %327 = vmatpush1.msra.mxu0 0.0
        %328 = vmatprep.subr.mxu0 0.0
        %329 = vmatpush1.msra.mxu0 0.0
        %330 = vmatprep.subr.mxu0 0.0
        %331 = vmatpush1.msra.mxu0 0.0
        %332 = vmatprep.subr.mxu0 0.0
        %333 = vmatpush1.msra.mxu0 0.0
        %334 = vmatprep.subr.mxu0 0.0
        %335 = vmatpush1.msra.mxu0 0.0
        %336 = vmatprep.subr.mxu0 0.0
        %337 = vmatpush1.msra.mxu0 0.0
        %338 = vmatprep.subr.mxu0 0.0
        %339 = vmatpush1.msra.mxu0 0.0
        %340 = vmatprep.subr.mxu0 0.0
        %341 = vmatpush1.msra.mxu0 0.0
        %342 = vmatprep.subr.mxu0 0.0
        %343 = vmatpush1.msra.mxu0 0.0
        %344 = vmatprep.subr.mxu0 0.0
        %345 = vmatpush1.msra.mxu0 0.0
        %346 = vmatprep.subr.mxu0 0.0
        %347 = vmatpush1.msra.mxu0 0.0
        %348 = vmatprep.subr.mxu0 0.0
        %349 = vmatpush1.msra.mxu0 0.0
        %350 = vmatprep.subr.mxu0 0.0
        %351 = vmatpush1.msra.mxu0 0.0
        %352 = vmatprep.subr.mxu0 0.0
        %353 = vmatpush1.msra.mxu0 0.0
        %354 = vmatprep.subr.mxu0 0.0
        %355 = vmatpush1.msra.mxu0 0.0
        %356 = vmatprep.subr.mxu0 0.0
        %357 = vmatpush1.msra.mxu0 0.0
        %358 = vmatprep.subr.mxu0 0.0
        %359 = vmatpush1.msra.mxu0 0.0
        %360 = vmatprep.subr.mxu0 0.0
        %361 = vmatpush1.msra.mxu0 0.0
        %362 = vmatprep.subr.mxu0 0.0
        %363 = vmatpush1.msra.mxu0 0.0
        %364 = vmatprep.subr.mxu0 0.0
        %365 = vmatpush1.msra.mxu0 0.0
        %366 = vmatprep.subr.mxu0 0.0
        %367 = vmatpush1.msra.mxu0 0.0
        %368 = vmatprep.subr.mxu0 0.0
        %369 = vmatpush1.msra.mxu0 0.0
        %370 = vmatprep.subr.mxu0 0.0
        %371 = vmatpush1.msra.mxu0 0.0
        %372 = vmatprep.subr.mxu0 0.0
        %373 = vmatpush1.msra.mxu0 0.0
        %374 = vmatprep.mubr.f32.mxu0 0.0
        %375 = vmatmul.mubr.f32.gmra.mrb[0].mxu0 %v259
        %v376 = vpop.f32.mrb[0].mxu0
        %v377 = vadd.f32 0.0, %v376
        %v378 = vpop.f32.mrb[0].mxu0
        %379 = vmatprep.mubr.f32.mxu0 0.0
        %380 = vmatmul.mubr.f32.gmra.mrb[0].mxu0 %v262
        %v381 = vpop.f32.mrb[0].mxu0
        %v382 = vadd.f32 0.0, %v381
        %v383 = vpop.f32.mrb[0].mxu0
        %384 = vmatprep.mubr.f32.mxu0 0.0
        %385 = vmatmul.mubr.f32.gmra.mrb[0].mxu0 %v265
        %v386 = vpop.f32.mrb[0].mxu0
        %v387 = vadd.f32 0.0, %v386
        %v388 = vpop.f32.mrb[0].mxu0
        %389 = vmatprep.mubr.f32.mxu0 0.0
        %390 = vmatmul.mubr.f32.gmra.mrb[0].mxu0 %v268
        %v391 = vpop.f32.mrb[0].mxu0
        %v392 = vadd.f32 0.0, %v391
        %v393 = vpop.f32.mrb[0].mxu0
        %394 = vmatprep.mubr.f32.mxu0 0.0
        %395 = vmatmul.mubr.f32.gmra.mrb[0].mxu0 %v271
        %v396 = vpop.f32.mrb[0].mxu0
        %v397 = vadd.f32 0.0, %v396
        %v398 = vpop.f32.mrb[0].mxu0
        %399 = vmatprep.mubr.f32.mxu0 0.0
        %400 = vmatmul.mubr.f32.gmra.mrb[0].mxu0 %v274
        %v401 = vpop.f32.mrb[0].mxu0
        %v402 = vadd.f32 0.0, %v401
        %v403 = vpop.f32.mrb[0].mxu0
        %404 = vmatprep.mubr.f32.mxu0 0.0
        %405 = vmatmul.mubr.f32.gmra.mrb[0].mxu0 %v277
        %v406 = vpop.f32.mrb[0].mxu0
        %v407 = vadd.f32 0.0, %v406
        %v408 = vpop.f32.mrb[0].mxu0
        %409 = vmatprep.mubr.f32.mxu0 0.0
        %410 = vmatmul.mubr.f32.gmra.mrb[0].mxu0 %v280
        %v411 = vpop.f32.mrb[0].mxu0
        %v412 = vadd.f32 0.0, %v411
        %v413 = vpop.f32.mrb[0].mxu0
        %414 = vmatprep.mubr.f32.mxu0 0.0
        %415 = vmatmul.mubr.f32.gmra.mrb[0].mxu0 %v283
        %v416 = vpop.f32.mrb[0].mxu0
        %v417 = vadd.f32 0.0, %v416
        %v418 = vpop.f32.mrb[0].mxu0
        %419 = vmatprep.mubr.f32.mxu0 0.0
        %420 = vmatmul.mubr.f32.gmra.mrb[0].mxu0 %v286
        %v421 = vpop.f32.mrb[0].mxu0
        %v422 = vadd.f32 0.0, %v421
        %v423 = vpop.f32.mrb[0].mxu0
        %424 = vmatprep.mubr.f32.mxu0 0.0
        %425 = vmatmul.mubr.f32.gmra.mrb[0].mxu0 %v289
        %v426 = vpop.f32.mrb[0].mxu0
        %v427 = vadd.f32 0.0, %v426
        %v428 = vpop.f32.mrb[0].mxu0
        %429 = vmatprep.mubr.f32.mxu0 0.0
        %430 = vmatmul.mubr.f32.gmra.mrb[0].mxu0 %v292
        %v431 = vpop.f32.mrb[0].mxu0
        %v432 = vadd.f32 0.0, %v431
        %v433 = vpop.f32.mrb[0].mxu0
        %434 = vmatprep.mubr.f32.mxu0 0.0
        %435 = vmatmul.mubr.f32.gmra.mrb[0].mxu0 %v295
        %v436 = vpop.f32.mrb[0].mxu0
        %v437 = vadd.f32 0.0, %v436
        %v438 = vpop.f32.mrb[0].mxu0
        %439 = vmatprep.mubr.f32.mxu0 0.0
        %440 = vmatmul.mubr.f32.gmra.mrb[0].mxu0 %v298
        %v441 = vpop.f32.mrb[0].mxu0
        %v442 = vadd.f32 0.0, %v441
        %v443 = vpop.f32.mrb[0].mxu0
        %444 = vmatprep.mubr.f32.mxu0 0.0
        %445 = vmatmul.mubr.f32.gmra.mrb[0].mxu0 %v301
        %v446 = vpop.f32.mrb[0].mxu0
        %v447 = vadd.f32 0.0, %v446
        %v448 = vpop.f32.mrb[0].mxu0
        %449 = vmatprep.mubr.f32.mxu0 0.0
        %450 = vmatmul.mubr.f32.gmra.mrb[0].mxu0 %v304
        %v451 = vpop.f32.mrb[0].mxu0
        %v452 = vadd.f32 0.0, %v451
        %v453 = vpop.f32.mrb[0].mxu0
        %454 = vdwg.mxu0
        %vm455 = vcmask 261120
        %456 = vst.msk [vmem:[%s221] sm:$0xff] %vm455, %v377
        %457 = vst.msk [vmem:[%s221 + $0x8] sm:$0xff] %vm455, %v382
        %458 = vst.msk [vmem:[%s221 + $0x10] sm:$0xff] %vm455, %v387
        %459 = vst.msk [vmem:[%s221 + $0x18] sm:$0xff] %vm455, %v392
        %460 = vst.msk [vmem:[%s221 + $0x20] sm:$0xff] %vm455, %v397
        %461 = vst.msk [vmem:[%s221 + $0x28] sm:$0xff] %vm455, %v402
        %462 = vst.msk [vmem:[%s221 + $0x30] sm:$0xff] %vm455, %v407
        %463 = vst.msk [vmem:[%s221 + $0x38] sm:$0xff] %vm455, %v412
        %464 = vst.msk [vmem:[%s221 + $0x40] sm:$0xff] %vm455, %v417
        %465 = vst.msk [vmem:[%s221 + $0x48] sm:$0xff] %vm455, %v422
        %466 = vst.msk [vmem:[%s221 + $0x50] sm:$0xff] %vm455, %v427
        %467 = vst.msk [vmem:[%s221 + $0x58] sm:$0xff] %vm455, %v432
        %468 = vst.msk [vmem:[%s221 + $0x60] sm:$0xff] %vm455, %v437
        %469 = vst.msk [vmem:[%s221 + $0x68] sm:$0xff] %vm455, %v442
        %470 = vst.msk [vmem:[%s221 + $0x70] sm:$0xff] %vm455, %v447
        %471 = vst.msk [vmem:[%s221 + $0x78] sm:$0xff] %vm455, %v452
        %s472 = smul.u32 16, %s24
        %p473 = scmp.lt.s32.totalorder %s22, 1
        %s474 = scalar_select %p473, %s22, 1
        %p475 = scmp.lt.s32.totalorder %s472, 31
        %s476 = scalar_select %p475, %s472, 31
        %p477 = scmp.lt.s32.totalorder %s23, 0
        %s478 = scalar_select %p477, %s23, 0
        %s479 = sadd.s32 %s478, %s476
        %s480 = smul.addr %s474, 32
        %s481 = sadd.s32 %s479, %s480
        %s482 = smul.addr %s481, 8
        %s483 = scalar_lea.vmem %s2, %s482
        // Predicated region
        $region37: #{tpu_custom_call.1} parent=27 // pred_check
          %p484 = pneg %p112
        $region38: #{tpu_custom_call.1} parent=27 // pred_check_branch
          %486 = sbr.rel (%p484) target = $region40
        $region39: #{tpu_custom_call.1} parent=27 // pred_region
          %s487 = smul.u32 16, %s24
        $region40: #{tpu_custom_call.1} parent=27 // pred_fallthru
          _
      $region28: #{tpu_custom_call.1} parent=5 // pred_fallthru
        _
      %p488 = scmp.le.s32.totalorder 2, %s12
      // Predicated region
      $region41: #{tpu_custom_call.1} parent=5 // pred_check
        %p489 = pneg %p488
      $region42: #{tpu_custom_call.1} parent=5 // pred_check_branch
        %491 = sbr.rel (%p489) target = $region44
      $region43: #{tpu_custom_call.1} parent=5 // pred_region
        %s492 = ssub.s32 %s12, 2
        // Predicated region
        $region45: #{tpu_custom_call.1} parent=43 // pred_check
          %p493 = pneg %p118
        $region46: #{tpu_custom_call.1} parent=43 // pred_check_branch
          %495 = sbr.rel (%p493) target = $region48
        $region47: #{tpu_custom_call.1} parent=43 // pred_region
          %s496 = smul.u32 16, %s27
          %p497 = scmp.lt.s32.totalorder %s25, 1
          %s498 = scalar_select %p497, %s25, 1
          %p499 = scmp.lt.s32.totalorder %s496, 31
          %s500 = scalar_select %p499, %s496, 31
          %p501 = scmp.lt.s32.totalorder %s26, 0
          %s502 = scalar_select %p501, %s26, 0
          %s503 = sadd.s32 %s502, %s500
          %s504 = smul.addr %s498, 32
          %s505 = sadd.s32 %s503, %s504
          %s506 = smul.addr %s505, 8
          %s507 = scalar_lea.vmem %s2, %s506
        $region48: #{tpu_custom_call.1} parent=43 // pred_fallthru
          _
      $region44: #{tpu_custom_call.1} parent=5 // pred_fallthru
        _
    $region6: #{tpu_custom_call.1} parent=1 // loop_footer
      %s16 = sadd.s32 1, %s12
    $region7: #{tpu_custom_call.1} parent=1 // loop_footer_branch
      %11 = sbr.rel target = $region3
    $region8: #{tpu_custom_call.1} parent=1 // loop_exit
      _
    %508 = vsyncpa [#allocation3], 1
    %s509 = scalar_lea.sflag [#allocation3], 1
    %510 = vsyncpa %s509, 1
    %511 = vsyncpa [#allocation5], 1

</llo_original>
